<compile_context>
chip_gen: v5e
topology: v5e:2x2
jax: 0.10.0
libtpu: 0.0.40
codegen_flags: <defaults>
</compile_context>

<pallas_src>
import jax
import jax.numpy as jnp
from jax.experimental import pallas as pl
from jax.experimental.pallas import tpu as pltpu


def qfunction_kernel(s_ref, a_ref, w1s_ref, w1a_ref, b1_ref,
                     w2_ref, b2_ref, w3_ref, b3_ref, o_ref):
    """Feature-major MLP tile: activations are (features, batch_tile)."""
    # Layer 1: fused concat -> two MXU dots, f32 accumulation, f32 bias + ReLU.
    h = (jnp.dot(w1s_ref[...], s_ref[...], preferred_element_type=jnp.float32)
         + jnp.dot(w1a_ref[...], a_ref[...], preferred_element_type=jnp.float32)
         + b1_ref[...])
    h = jnp.maximum(h, 0.0)

    # Layer 2: Linear + ReLU (cast accumulator back to the streaming dtype for the MXU).
    h = jnp.dot(w2_ref[...], h.astype(w2_ref.dtype),
                preferred_element_type=jnp.float32) + b2_ref[...]
    h = jnp.maximum(h, 0.0)

    # Output layer: Linear(., 1) + Identity  -> (1, batch_tile), lane-dense store.
    q = jnp.dot(w3_ref[...], h.astype(w3_ref.dtype),
                preferred_element_type=jnp.float32) + b3_ref[...]
    o_ref[...] = q.astype(o_ref.dtype)


def _pick_batch_tile(B):
    # Many grid steps (pipelining + v7x dual-TC sharding) while keeping each
    # double-buffered activation tile tiny relative to VMEM (64 MiB on v7x).
    for cand in (8192, 4096, 2048, 1024, 512, 256, 128):
        if B % cand == 0:
            return cand
    return B  # small batches: single full-width tile


def qfunction_forward(state, action, params, *, batch_tile=None,
                      compute_dtype=jnp.float32):
    """Runs the QFunction MLP. Returns shape (B,) like torch.squeeze(q, -1)."""
    B, state_dim = state.shape
    Ba, action_dim = action.shape
    assert B == Ba
    w1, b1, w2, b2, w3, b3 = params
    H1 = w1.shape[1]
    H2 = w2.shape[1]

    if batch_tile is None:
        batch_tile = _pick_batch_tile(B)
    assert B % batch_tile == 0, "batch must be divisible by batch_tile"
    # Lane-dim constraint for the feature-major layout.
    assert batch_tile == B or batch_tile % 128 == 0, (
        "batch_tile must be a multiple of 128 (or equal to the full batch)")
    grid = (B // batch_tile,)

    # --- layout plumbing (one-time, outside the hot loop) ---------------------
    # Feature-major activations: lane axis = batch.
    sT = state.T.astype(compute_dtype)               # (state_dim, B)
    aT = action.T.astype(compute_dtype)              # (action_dim, B)
    # Weights pre-transposed so the kernel does W^T @ x; layer-1 weight split
    # into its state / action halves (fused concat).
    w1sT = jnp.asarray(w1[:state_dim].T, compute_dtype)   # (H1, state_dim)
    w1aT = jnp.asarray(w1[state_dim:].T, compute_dtype)   # (H1, action_dim)
    w2T = jnp.asarray(w2.T, compute_dtype)                # (H2, H1)
    w3T = jnp.asarray(w3.T, compute_dtype)                # (1,  H2)
    # Biases stay f32 (elementwise path stays f32 on every chip, incl. v5e).
    b1c = jnp.asarray(b1, jnp.float32).reshape(H1, 1)
    b2c = jnp.asarray(b2, jnp.float32).reshape(H2, 1)
    b3c = jnp.asarray(b3, jnp.float32).reshape(1, 1)

    full = lambda shape: pl.BlockSpec(shape, lambda i: (0,) * len(shape))

    q2d = pl.pallas_call(
        qfunction_kernel,
        out_shape=jax.ShapeDtypeStruct((1, B), jnp.float32),
        grid_spec=pltpu.PrefetchScalarGridSpec(
            num_scalar_prefetch=0,
            grid=grid,
            in_specs=[
                pl.BlockSpec((state_dim, batch_tile), lambda i: (0, i)),   # state tile
                pl.BlockSpec((action_dim, batch_tile), lambda i: (0, i)),  # action tile
                full((H1, state_dim)),   # w1 (state half, transposed)
                full((H1, action_dim)),  # w1 (action half, transposed)
                full((H1, 1)),           # b1
                full((H2, H1)),          # w2^T
                full((H2, 1)),           # b2
                full((1, H2)),           # w3^T
                full((1, 1)),            # b3
            ],
            out_specs=pl.BlockSpec((1, batch_tile), lambda i: (0, i)),     # lane-dense
        ),
        compiler_params=pltpu.CompilerParams(
            dimension_semantics=("parallel",)),
    )(sT, aT, w1sT, w1aT, b1c, w2T, b2c, w3T, b3c)

    return q2d.reshape(B)  # matches torch.squeeze(q, -1)


def init_params(key, state_dim, action_dim, hidden_sizes):
    """Deterministic init mimicking nn.Linear default (U[-1/sqrt(fan_in), +1/sqrt(fan_in)])."""
    sizes = [state_dim + action_dim] + list(hidden_sizes) + [1]
    params = []
    for j in range(len(sizes) - 1):
        fan_in, fan_out = sizes[j], sizes[j + 1]
        key, kw, kb = jax.random.split(key, 3)
        bound = 1.0 / jnp.sqrt(jnp.float32(fan_in))
        w = jax.random.uniform(kw, (fan_in, fan_out), jnp.float32, -bound, bound)
        b = jax.random.uniform(kb, (fan_out,), jnp.float32, -bound, bound)
        params += [w, b]
    return tuple(params)


def reference_forward(state, action, params):
    """Pure-JAX reference of the same MLP (correctness check)."""
    x = jnp.concatenate([state, action], axis=-1)
    w1, b1, w2, b2, w3, b3 = params
    h = jnp.maximum(x @ w1 + b1, 0.0)
    h = jnp.maximum(h @ w2 + b2, 0.0)
    q = h @ w3 + b3
    return jnp.squeeze(q, -1)


if __name__ == "__main__":
    # Small shapes consistent with a DDPG critic: flat state + action vectors.
    batch = 8
    state_dim = 12
    action_dim = 4
    hidden_sizes = (32, 32)  # activation = ReLU, output_activation = Identity

    key = jax.random.PRNGKey(0)
    key, ks, ka = jax.random.split(key, 3)
    state = jax.random.normal(ks, (batch, state_dim), jnp.float32)
    action = jax.random.normal(ka, (batch, action_dim), jnp.float32)

    params = init_params(key, state_dim, action_dim, hidden_sizes)
    q_ref = reference_forward(state, action, params)

    # f32 streaming path (tight tolerance).
    q = jax.block_until_ready(qfunction_forward(state, action, params))
    assert q.shape == (batch,), q.shape
    assert jnp.allclose(q, q_ref, atol=1e-5, rtol=1e-5), (q, q_ref)

    # bf16 streaming path (v6e/v7x HBM-traffic halving; f32 accumulate -> loose tol).
    q_bf16 = jax.block_until_ready(
        qfunction_forward(state, action, params, compute_dtype=jnp.bfloat16))
    assert q_bf16.shape == (batch,), q_bf16.shape
    assert jnp.allclose(q_bf16, q_ref, atol=5e-2, rtol=5e-2), (q_bf16, q_ref)

    print("KERNEL_OK")
</pallas_src>

<mosaic_0001>
module attributes {stable_mosaic.version = 11 : i64} {
  func.func @qfunction_kernel(%arg0: i32, %arg1: memref<12x8xf32, #tpu.memory_space<vmem>>, %arg2: memref<4x8xf32, #tpu.memory_space<vmem>>, %arg3: memref<32x12xf32, #tpu.memory_space<vmem>>, %arg4: memref<32x4xf32, #tpu.memory_space<vmem>>, %arg5: memref<32x1xf32, #tpu.memory_space<vmem>>, %arg6: memref<32x32xf32, #tpu.memory_space<vmem>>, %arg7: memref<32x1xf32, #tpu.memory_space<vmem>>, %arg8: memref<1x32xf32, #tpu.memory_space<vmem>>, %arg9: memref<1x1xf32, #tpu.memory_space<vmem>>, %arg10: memref<1x8xf32, #tpu.memory_space<vmem>>) attributes {dimension_semantics = [#tpu.dimension_semantics<parallel>], iteration_bounds = array<i64: 1>, scalar_prefetch = 0 : i64, scratch_operands = 0 : i64, tpu.core_type = #tpu.core_type<tc>, window_params = [{transform_indices = @transform_0, window_bounds = array<i64: 12, 8>}, {transform_indices = @transform_1, window_bounds = array<i64: 4, 8>}, {pipeline_mode = #tpu.pipeline_mode<synchronous>, transform_indices = @transform_2, window_bounds = array<i64: 32, 12>}, {pipeline_mode = #tpu.pipeline_mode<synchronous>, transform_indices = @transform_3, window_bounds = array<i64: 32, 4>}, {pipeline_mode = #tpu.pipeline_mode<synchronous>, transform_indices = @transform_4, window_bounds = array<i64: 32, 1>}, {pipeline_mode = #tpu.pipeline_mode<synchronous>, transform_indices = @transform_5, window_bounds = array<i64: 32, 32>}, {pipeline_mode = #tpu.pipeline_mode<synchronous>, transform_indices = @transform_6, window_bounds = array<i64: 32, 1>}, {pipeline_mode = #tpu.pipeline_mode<synchronous>, transform_indices = @transform_7, window_bounds = array<i64: 1, 32>}, {pipeline_mode = #tpu.pipeline_mode<synchronous>, transform_indices = @transform_8, window_bounds = array<i64: 1, 1>}, {transform_indices = @transform_9, window_bounds = array<i64: 1, 8>}]} {
    %c0 = arith.constant 0 : index
    %c0_0 = arith.constant 0 : index
    %0 = vector.load %arg3[%c0, %c0_0] : memref<32x12xf32, #tpu.memory_space<vmem>>, vector<32x12xf32>
    %c0_1 = arith.constant 0 : index
    %c0_2 = arith.constant 0 : index
    %1 = vector.load %arg1[%c0_1, %c0_2] : memref<12x8xf32, #tpu.memory_space<vmem>>, vector<12x8xf32>
    %cst = arith.constant dense<0.000000e+00> : vector<32x8xf32>
    %2 = tpu.matmul %0, %1, %cst {dimension_numbers = #tpu.dot_dimension_numbers<[1], [0], [0], [1], [0, 0, 1, 1], [], []>} : vector<32x12xf32>, vector<12x8xf32>, vector<32x8xf32> -> vector<32x8xf32>
    %c0_3 = arith.constant 0 : index
    %c0_4 = arith.constant 0 : index
    %3 = vector.load %arg4[%c0_3, %c0_4] : memref<32x4xf32, #tpu.memory_space<vmem>>, vector<32x4xf32>
    %c0_5 = arith.constant 0 : index
    %c0_6 = arith.constant 0 : index
    %4 = vector.load %arg2[%c0_5, %c0_6] : memref<4x8xf32, #tpu.memory_space<vmem>>, vector<4x8xf32>
    %cst_7 = arith.constant dense<0.000000e+00> : vector<32x8xf32>
    %5 = tpu.matmul %3, %4, %cst_7 {dimension_numbers = #tpu.dot_dimension_numbers<[1], [0], [0], [1], [0, 0, 1, 1], [], []>} : vector<32x4xf32>, vector<4x8xf32>, vector<32x8xf32> -> vector<32x8xf32>
    %6 = arith.addf %2, %5 : vector<32x8xf32>
    %c0_8 = arith.constant 0 : index
    %c0_9 = arith.constant 0 : index
    %7 = vector.load %arg5[%c0_8, %c0_9] : memref<32x1xf32, #tpu.memory_space<vmem>>, vector<32x1xf32>
    %8 = vector.broadcast %7 : vector<32x1xf32> to vector<32x8xf32>
    %9 = arith.addf %6, %8 : vector<32x8xf32>
    %cst_10 = arith.constant 0.000000e+00 : f32
    %10 = vector.broadcast %cst_10 : f32 to vector<32x8xf32>
    %11 = arith.maximumf %9, %10 : vector<32x8xf32>
    %c0_11 = arith.constant 0 : index
    %c0_12 = arith.constant 0 : index
    %12 = vector.load %arg6[%c0_11, %c0_12] : memref<32x32xf32, #tpu.memory_space<vmem>>, vector<32x32xf32>
    %cst_13 = arith.constant dense<0.000000e+00> : vector<32x8xf32>
    %13 = tpu.matmul %12, %11, %cst_13 {dimension_numbers = #tpu.dot_dimension_numbers<[1], [0], [0], [1], [0, 0, 1, 1], [], []>} : vector<32x32xf32>, vector<32x8xf32>, vector<32x8xf32> -> vector<32x8xf32>
    %c0_14 = arith.constant 0 : index
    %c0_15 = arith.constant 0 : index
    %14 = vector.load %arg7[%c0_14, %c0_15] : memref<32x1xf32, #tpu.memory_space<vmem>>, vector<32x1xf32>
    %15 = vector.broadcast %14 : vector<32x1xf32> to vector<32x8xf32>
    %16 = arith.addf %13, %15 : vector<32x8xf32>
    %cst_16 = arith.constant 0.000000e+00 : f32
    %17 = vector.broadcast %cst_16 : f32 to vector<32x8xf32>
    %18 = arith.maximumf %16, %17 : vector<32x8xf32>
    %c0_17 = arith.constant 0 : index
    %c0_18 = arith.constant 0 : index
    %19 = vector.load %arg8[%c0_17, %c0_18] : memref<1x32xf32, #tpu.memory_space<vmem>>, vector<1x32xf32>
    %cst_19 = arith.constant dense<0.000000e+00> : vector<1x8xf32>
    %20 = tpu.matmul %19, %18, %cst_19 {dimension_numbers = #tpu.dot_dimension_numbers<[1], [0], [0], [1], [0, 0, 1, 1], [], []>} : vector<1x32xf32>, vector<32x8xf32>, vector<1x8xf32> -> vector<1x8xf32>
    %c0_20 = arith.constant 0 : index
    %c0_21 = arith.constant 0 : index
    %21 = vector.load %arg9[%c0_20, %c0_21] : memref<1x1xf32, #tpu.memory_space<vmem>>, vector<1x1xf32>
    %22 = vector.broadcast %21 : vector<1x1xf32> to vector<1x8xf32>
    %23 = arith.addf %20, %22 : vector<1x8xf32>
    %c0_22 = arith.constant 0 : index
    %c0_23 = arith.constant 0 : index
    %24 = vector.load %arg10[%c0_22, %c0_23] : memref<1x8xf32, #tpu.memory_space<vmem>>, vector<1x8xf32>
    tpu.vector_store %arg10[%c0_22, %c0_23], %23 {strides = array<i32>} : memref<1x8xf32, #tpu.memory_space<vmem>>, vector<1x8xf32>,
    return
  }
  func.func @transform_0(%arg0: i32) -> (i32, i32) {
    %c0_i32 = arith.constant 0 : i32
    %c0_i32_0 = arith.constant 0 : i32
    return %c0_i32, %arg0 : i32, i32
  }
  func.func @transform_1(%arg0: i32) -> (i32, i32) {
    %c0_i32 = arith.constant 0 : i32
    %c0_i32_0 = arith.constant 0 : i32
    return %c0_i32, %arg0 : i32, i32
  }
  func.func @transform_2(%arg0: i32) -> (i32, i32) {
    %c0_i32 = arith.constant 0 : i32
    %c0_i32_0 = arith.constant 0 : i32
    %c0_i32_1 = arith.constant 0 : i32
    return %c0_i32, %c0_i32_0 : i32, i32
  }
  func.func @transform_3(%arg0: i32) -> (i32, i32) {
    %c0_i32 = arith.constant 0 : i32
    %c0_i32_0 = arith.constant 0 : i32
    %c0_i32_1 = arith.constant 0 : i32
    return %c0_i32, %c0_i32_0 : i32, i32
  }
  func.func @transform_4(%arg0: i32) -> (i32, i32) {
    %c0_i32 = arith.constant 0 : i32
    %c0_i32_0 = arith.constant 0 : i32
    %c0_i32_1 = arith.constant 0 : i32
    return %c0_i32, %c0_i32_0 : i32, i32
  }
  func.func @transform_5(%arg0: i32) -> (i32, i32) {
    %c0_i32 = arith.constant 0 : i32
    %c0_i32_0 = arith.constant 0 : i32
    %c0_i32_1 = arith.constant 0 : i32
    return %c0_i32, %c0_i32_0 : i32, i32
  }
  func.func @transform_6(%arg0: i32) -> (i32, i32) {
    %c0_i32 = arith.constant 0 : i32
    %c0_i32_0 = arith.constant 0 : i32
    %c0_i32_1 = arith.constant 0 : i32
    return %c0_i32, %c0_i32_0 : i32, i32
  }
  func.func @transform_7(%arg0: i32) -> (i32, i32) {
    %c0_i32 = arith.constant 0 : i32
    %c0_i32_0 = arith.constant 0 : i32
    %c0_i32_1 = arith.constant 0 : i32
    return %c0_i32, %c0_i32_0 : i32, i32
  }
  func.func @transform_8(%arg0: i32) -> (i32, i32) {
    %c0_i32 = arith.constant 0 : i32
    %c0_i32_0 = arith.constant 0 : i32
    %c0_i32_1 = arith.constant 0 : i32
    return %c0_i32, %c0_i32_0 : i32, i32
  }
  func.func @transform_9(%arg0: i32) -> (i32, i32) {
    %c0_i32 = arith.constant 0 : i32
    %c0_i32_0 = arith.constant 0 : i32
    return %c0_i32, %arg0 : i32, i32
  }
}

</mosaic_0001>

<llo_original>
// kernel: tpu_custom_call.1
$region0: #{tpu_custom_call.1}
  #allocation0 [shape = 'u32[]', space=smem, size = 0x4, offset = 0x4, fixed_abs, tag = 'smem constant byte address 0x4 - core index']
  #allocation1 [shape = 'u32[72,128]{1,0:T(1,128)}', space=vmem, size = 0x9000, scoped, tag = 'internal scratch']
  #allocation2 [shape = 'f32[1,1]{1,0:T(1,128)S(1)}', space=vmem, size = 0x200, scoped, tag = 'scoped memory for tpu_custom_call.1']
  %s0 = inlined_call_operand.vmem [shape: f32[12,8], index: 0, kind: input, shape index: {}]
  %s1 = inlined_call_operand.vmem [shape: f32[4,8], index: 1, kind: input, shape index: {}]
  %s2 = inlined_call_operand.vmem [shape: f32[32,12], index: 2, kind: input, shape index: {}]
  %s3 = inlined_call_operand.vmem [shape: f32[32,4], index: 3, kind: input, shape index: {}]
  %s4 = inlined_call_operand.vmem [shape: f32[32,1], index: 4, kind: input, shape index: {}]
  %s5 = inlined_call_operand.vmem [shape: f32[32,32], index: 5, kind: input, shape index: {}]
  %s6 = inlined_call_operand.vmem [shape: f32[32,1], index: 6, kind: input, shape index: {}]
  %s7 = inlined_call_operand.vmem [shape: f32[1,32], index: 7, kind: input, shape index: {}]
  %s8 = inlined_call_operand.<no memory space> [shape: f32[1,1], index: 8, kind: input, shape index: {}]
  %s9 = inlined_call_operand.hbm [shape: f32[1,8], index: 9, kind: output, shape index: {}]
  %s10 = sld [smem:[#allocation0]]
  $region46: #{tpu_custom_call.1} parent=0
    _
  %s12 = ssub.s32 1, %s10
  %s13 = scalar_select 0, %s12, %s10
  %v14 = vstv %s8
  %15 = vst [vmem:[#allocation2] sm:$0x1] %v14
  $region1: #{tpu_custom_call.1} parent=0
    #allocation3 [shape = 'u8[512]{0}', space=vmem, size = 0x400, scoped, tag = 'output window, operand 0, single buffered']
    #allocation4 [shape = 's32[1]{0}', space=sflag, size = 0x4, scoped, tag = 'scoped memory for tpu_custom_call.1']
    %16 = vsyncpa [#allocation4], 0
    // Predicated region
    $region2: #{tpu_custom_call.1} parent=1 // pred_check
      _
    $region3: #{tpu_custom_call.1} parent=1 // pred_check_branch
      %18 = sbr.rel (0) target = $region5
    $region4: #{tpu_custom_call.1} parent=1 // pred_region
      _
    $region5: #{tpu_custom_call.1} parent=1 // pred_fallthru
      _
    // Predicated region
    $region6: #{tpu_custom_call.1} parent=1 // pred_check
      _
    $region7: #{tpu_custom_call.1} parent=1 // pred_check_branch
      %20 = sbr.rel (0) target = $region9
    $region8: #{tpu_custom_call.1} parent=1 // pred_region
      _
    $region9: #{tpu_custom_call.1} parent=1 // pred_fallthru
      _
    // Predicated region
    $region10: #{tpu_custom_call.1} parent=1 // pred_check
      _
    $region11: #{tpu_custom_call.1} parent=1 // pred_check_branch
      %22 = sbr.rel (0) target = $region13
    $region12: #{tpu_custom_call.1} parent=1 // pred_region
      _
    $region13: #{tpu_custom_call.1} parent=1 // pred_fallthru
      _
    // Predicated region
    $region14: #{tpu_custom_call.1} parent=1 // pred_check
      _
    $region15: #{tpu_custom_call.1} parent=1 // pred_check_branch
      %24 = sbr.rel (0) target = $region17
    $region16: #{tpu_custom_call.1} parent=1 // pred_region
      _
    $region17: #{tpu_custom_call.1} parent=1 // pred_fallthru
      _
    // Predicated region
    $region18: #{tpu_custom_call.1} parent=1 // pred_check
      _
    $region19: #{tpu_custom_call.1} parent=1 // pred_check_branch
      %26 = sbr.rel (0) target = $region21
    $region20: #{tpu_custom_call.1} parent=1 // pred_region
      _
    $region21: #{tpu_custom_call.1} parent=1 // pred_fallthru
      _
    // Predicated region
    $region22: #{tpu_custom_call.1} parent=1 // pred_check
      _
    $region23: #{tpu_custom_call.1} parent=1 // pred_check_branch
      %28 = sbr.rel (0) target = $region25
    $region24: #{tpu_custom_call.1} parent=1 // pred_region
      _
    $region25: #{tpu_custom_call.1} parent=1 // pred_fallthru
      _
    // Predicated region
    $region26: #{tpu_custom_call.1} parent=1 // pred_check
      _
    $region27: #{tpu_custom_call.1} parent=1 // pred_check_branch
      %30 = sbr.rel (0) target = $region29
    $region28: #{tpu_custom_call.1} parent=1 // pred_region
      _
    $region29: #{tpu_custom_call.1} parent=1 // pred_fallthru
      _
    // Predicated region
    $region30: #{tpu_custom_call.1} parent=1 // pred_check
      _
    $region31: #{tpu_custom_call.1} parent=1 // pred_check_branch
      %32 = sbr.rel (0) target = $region33
    $region32: #{tpu_custom_call.1} parent=1 // pred_region
      _
    $region33: #{tpu_custom_call.1} parent=1 // pred_fallthru
      _
    // Predicated region
    $region34: #{tpu_custom_call.1} parent=1 // pred_check
      _
    $region35: #{tpu_custom_call.1} parent=1 // pred_check_branch
      %34 = sbr.rel (0) target = $region37
    $region36: #{tpu_custom_call.1} parent=1 // pred_region
      _
    $region37: #{tpu_custom_call.1} parent=1 // pred_fallthru
      _
    %v35 = vld [vmem:[%s2] sm:$0xff]
    %v36 = vld [vmem:[%s2 + $0x8] sm:$0xff]
    %v37 = vld [vmem:[%s2 + $0x10] sm:$0xff]
    %v38 = vld [vmem:[%s2 + $0x18] sm:$0xff]
    %v39 = vld [vmem:[%s0] sm:$0xff]
    %v40 = vld [vmem:[%s0 + $0x8] sm:$0xf]
    %v41 = vld [vmem:[%s3] sm:$0xff]
    %v42 = vld [vmem:[%s3 + $0x8] sm:$0xff]
    %v43 = vld [vmem:[%s3 + $0x10] sm:$0xff]
    %v44 = vld [vmem:[%s3 + $0x18] sm:$0xff]
    %v45 = vld [vmem:[%s1] sm:$0xf]
    %vm46 = vcmask 31744
    %v48 = vsel %vm46, %v41, 0
    %v51 = vsel %vm46, %v42, 0
    %v54 = vsel %vm46, %v43, 0
    %v57 = vsel %vm46, %v44, 0
    %vm59 = vcmask 1043456
    %v61 = vsel %vm59, %v45, 0
    %63 = vmatpush.msra.mxu0 0.0
    %64 = vmatpush.msra.mxu0 0.0
    %65 = vmatpush.msra.mxu0 0.0
    %66 = vmatpush.msra.mxu0 0.0
    %67 = vmatpush.msra.mxu0 0.0
    %68 = vmatpush.msra.mxu0 0.0
    %69 = vmatpush.msra.mxu0 0.0
    %70 = vmatpush.msra.mxu0 0.0
    %71 = vmatpush.msra.mxu0 0.0
    %72 = vmatpush.msra.mxu0 0.0
    %73 = vmatpush.msra.mxu0 0.0
    %74 = vmatpush.msra.mxu0 0.0
    %75 = vmatpush.msra.mxu0 0.0
    %76 = vmatpush.msra.mxu0 0.0
    %77 = vmatpush.msra.mxu0 0.0
    %78 = vmatpush.msra.mxu0 %v61
    %79 = vmatmul.f32.gmra.mxu0 %v48
    %v80 = vpop.f32.mrf.mxu0
    %v81 = vadd.f32 0.0, %v80
    %82 = vmatmul.f32.gmra.mxu0 %v51
    %v83 = vpop.f32.mrf.mxu0
    %v84 = vadd.f32 0.0, %v83
    %85 = vmatmul.f32.gmra.mxu0 %v54
    %v86 = vpop.f32.mrf.mxu0
    %v87 = vadd.f32 0.0, %v86
    %88 = vmatmul.f32.gmra.mxu0 %v57
    %v89 = vpop.f32.mrf.mxu0
    %v90 = vadd.f32 0.0, %v89
    %91 = vdwg.mxu0
    %vm92 = vcmask 97280
    %v94 = vsel %vm92, %v35, 0
    %v97 = vsel %vm92, %v36, 0
    %v100 = vsel %vm92, %v37, 0
    %v103 = vsel %vm92, %v38, 0
    %v106 = vsel %vm59, %v40, 0
    %108 = vmatpush.msra.mxu0 0.0
    %109 = vmatpush.msra.mxu0 0.0
    %110 = vmatpush.msra.mxu0 0.0
    %111 = vmatpush.msra.mxu0 0.0
    %112 = vmatpush.msra.mxu0 0.0
    %113 = vmatpush.msra.mxu0 0.0
    %114 = vmatpush.msra.mxu0 0.0
    %115 = vmatpush.msra.mxu0 0.0
    %116 = vmatpush.msra.mxu0 0.0
    %117 = vmatpush.msra.mxu0 0.0
    %118 = vmatpush.msra.mxu0 0.0
    %119 = vmatpush.msra.mxu0 0.0
    %120 = vmatpush.msra.mxu0 0.0
    %121 = vmatpush.msra.mxu0 0.0
    %122 = vmatpush.msra.mxu0 %v106
    %123 = vmatpush.msra.mxu0 %v39
    %124 = vmatmul.f32.gmra.mxu0 %v94
    %v125 = vpop.f32.mrf.mxu0
    %v126 = vadd.f32 %v81, %v125
    %127 = vmatmul.f32.gmra.mxu0 %v97
    %v128 = vpop.f32.mrf.mxu0
    %v129 = vadd.f32 %v84, %v128
    %130 = vmatmul.f32.gmra.mxu0 %v100
    %v131 = vpop.f32.mrf.mxu0
    %v132 = vadd.f32 %v87, %v131
    %133 = vmatmul.f32.gmra.mxu0 %v103
    %v134 = vpop.f32.mrf.mxu0
    %v135 = vadd.f32 %v90, %v134
    %136 = vdwg.mxu0
    %v137 = vld [vmem:[%s4] sm:$0xff]
    %v138 = vld [vmem:[%s4 + $0x8] sm:$0xff]
    %v139 = vld [vmem:[%s4 + $0x10] sm:$0xff]
    %v140 = vld [vmem:[%s4 + $0x18] sm:$0xff]
    %142 = vset.pattern.permute.xlu0 0
    %143 = vperm.xlu0 %142, %v137
    %v144 = vpop.permute.xlu0 %143
    %147 = vset.pattern.permute.xlu0 0
    %148 = vperm.xlu0 %147, %v138
    %v149 = vpop.permute.xlu0 %148
    %152 = vset.pattern.permute.xlu0 0
    %153 = vperm.xlu0 %152, %v139
    %v154 = vpop.permute.xlu0 %153
    %157 = vset.pattern.permute.xlu0 0
    %158 = vperm.xlu0 %157, %v140
    %v159 = vpop.permute.xlu0 %158
    %v161 = vadd.f32 %v126, %v144
    %v162 = vadd.f32 %v129, %v149
    %v163 = vadd.f32 %v132, %v154
    %v164 = vadd.f32 %v135, %v159
    %v165 = vmax.f32 %v161, 0.0
    %v166 = vmax.f32 %v162, 0.0
    %v167 = vmax.f32 %v163, 0.0
    %v168 = vmax.f32 %v164, 0.0
    %v169 = vld [vmem:[%s5] sm:$0xff]
    %v170 = vld [vmem:[%s5 + $0x8] sm:$0xff]
    %v171 = vld [vmem:[%s5 + $0x10] sm:$0xff]
    %v172 = vld [vmem:[%s5 + $0x18] sm:$0xff]
    %v173 = vld [vmem:[%s6] sm:$0xff]
    %v174 = vld [vmem:[%s6 + $0x8] sm:$0xff]
    %v175 = vld [vmem:[%s6 + $0x10] sm:$0xff]
    %v176 = vld [vmem:[%s6 + $0x18] sm:$0xff]
    %178 = vset.pattern.permute.xlu0 0
    %179 = vperm.xlu0 %178, %v173
    %v180 = vpop.permute.xlu0 %179
    %183 = vset.pattern.permute.xlu0 0
    %184 = vperm.xlu0 %183, %v174
    %v185 = vpop.permute.xlu0 %184
    %188 = vset.pattern.permute.xlu0 0
    %189 = vperm.xlu0 %188, %v175
    %v190 = vpop.permute.xlu0 %189
    %193 = vset.pattern.permute.xlu0 0
    %194 = vperm.xlu0 %193, %v176
    %v195 = vpop.permute.xlu0 %194
    %vm197 = vcmask 261120
    %v199 = vsel %vm197, %v169, 0
    %v202 = vsel %vm197, %v170, 0
    %v205 = vsel %vm197, %v171, 0
    %v208 = vsel %vm197, %v172, 0
    %210 = vmatpush.msra.mxu0 0.0
    %211 = vmatpush.msra.mxu0 0.0
    %212 = vmatpush.msra.mxu0 0.0
    %213 = vmatpush.msra.mxu0 0.0
    %214 = vmatpush.msra.mxu0 0.0
    %215 = vmatpush.msra.mxu0 0.0
    %216 = vmatpush.msra.mxu0 0.0
    %217 = vmatpush.msra.mxu0 0.0
    %218 = vmatpush.msra.mxu0 0.0
    %219 = vmatpush.msra.mxu0 0.0
    %220 = vmatpush.msra.mxu0 0.0
    %221 = vmatpush.msra.mxu0 0.0
    %222 = vmatpush.msra.mxu0 %v168
    %223 = vmatpush.msra.mxu0 %v167
    %224 = vmatpush.msra.mxu0 %v166
    %225 = vmatpush.msra.mxu0 %v165
    %226 = vmatmul.f32.gmra.mxu0 %v199
    %v227 = vpop.f32.mrf.mxu0
    %v228 = vadd.f32 %v180, %v227
    %229 = vmatmul.f32.gmra.mxu0 %v202
    %v230 = vpop.f32.mrf.mxu0
    %v231 = vadd.f32 %v185, %v230
    %232 = vmatmul.f32.gmra.mxu0 %v205
    %v233 = vpop.f32.mrf.mxu0
    %v234 = vadd.f32 %v190, %v233
    %235 = vmatmul.f32.gmra.mxu0 %v208
    %v236 = vpop.f32.mrf.mxu0
    %v237 = vadd.f32 %v195, %v236
    %238 = vdwg.mxu0
    %v239 = vmax.f32 %v228, 0.0
    %v240 = vmax.f32 %v231, 0.0
    %v241 = vmax.f32 %v234, 0.0
    %v242 = vmax.f32 %v237, 0.0
    %v243 = vld [vmem:[%s7] sm:$0x1]
    %v244 = vld [vmem:[#allocation2] sm:$0x1]
    %246 = vset.pattern.permute.xlu0 0
    %247 = vperm.xlu0 %246, %v244
    %v248 = vpop.permute.xlu0 %247
    %v250 = vperm.slane %v248, 0
    %v252 = vsel %vm197, %v243, 0
    %254 = vmatpush.msra.mxu0 0.0
    %255 = vmatpush.msra.mxu0 0.0
    %256 = vmatpush.msra.mxu0 0.0
    %257 = vmatpush.msra.mxu0 0.0
    %258 = vmatpush.msra.mxu0 0.0
    %259 = vmatpush.msra.mxu0 0.0
    %260 = vmatpush.msra.mxu0 0.0
    %261 = vmatpush.msra.mxu0 0.0
    %262 = vmatpush.msra.mxu0 0.0
    %263 = vmatpush.msra.mxu0 0.0
    %264 = vmatpush.msra.mxu0 0.0
    %265 = vmatpush.msra.mxu0 0.0
    %266 = vmatpush.msra.mxu0 %v242
    %267 = vmatpush.msra.mxu0 %v241
    %268 = vmatpush.msra.mxu0 %v240
    %269 = vmatpush.msra.mxu0 %v239
    %270 = vmatmul.f32.gmra.mxu0 %v252
    %v271 = vpop.f32.mrf.mxu0
    %v272 = vadd.f32 %v250, %v271
    %273 = vdwg.mxu0
    %vm274 = vcmask 57344
    %275 = vst.msk [vmem:[#allocation3] sm:$0x1] %vm274, %v272
    // Predicated region
    $region38: #{tpu_custom_call.1} parent=1 // pred_check
      _
    $region39: #{tpu_custom_call.1} parent=1 // pred_check_branch
      %277 = sbr.rel (0) target = $region41
    $region40: #{tpu_custom_call.1} parent=1 // pred_region
      %279 = vsyncadd [#allocation4], 0
      %s281 = sshll.u32 [#allocation3], 4
      %s282 = int_to_ptr.vmem [resolvable:$true] %s281
      %s283 = sshll.u32 %s9, 4
      %s284 = int_to_ptr.hbm [resolvable:$true] %s283
      %286 = dma.vmem_to_hbm [thread:$0]  %s282, 16, %s284, [#allocation4]
    $region41: #{tpu_custom_call.1} parent=1 // pred_fallthru
      _
    // Predicated region
    $region42: #{tpu_custom_call.1} parent=1 // pred_check
      _
    $region43: #{tpu_custom_call.1} parent=1 // pred_check_branch
      %288 = sbr.rel (0) target = $region45
    $region44: #{tpu_custom_call.1} parent=1 // pred_region
      %290 = dma.done [#allocation4], 16
    $region45: #{tpu_custom_call.1} parent=1 // pred_fallthru
      _
    %291 = vsyncpa [#allocation4], 1

</llo_original>
